<compile_context>
chip_gen: v5e
topology: v5e:2x2
jax: 0.10.0
libtpu: 0.0.40
codegen_flags: <defaults>
</compile_context>

<pallas_src>
import jax
import jax.numpy as jnp
from jax.experimental import pallas as pl
from jax.experimental.pallas import tpu as pltpu


def _round_up(x, m):
    return ((x + m - 1) // m) * m


def _lrlinear_kernel(x_ref, w_ref, b_ref, o_ref):
    # Cast the activation tile on-chip (VPU, hidden under the MXU), then a single
    # dense matmul on the folded (in, out) weight strip with f32 accumulation.
    x = x_ref[...].astype(w_ref.dtype)
    acc = jnp.dot(x, w_ref[...], preferred_element_type=jnp.float32)
    o_ref[...] = (acc + b_ref[...]).astype(o_ref.dtype)


def prepare_lrlinear_params(weight, bias, wq, bq, wp, bp, *, scale=1.0,
                            compute_dtype=jnp.bfloat16):
    """One-time parameter prep: fold adapter into the dense weight, transpose to
    (in, out) layout, pad oup to a lane multiple of 128, cast to the MXU input dtype.

    weight: (oup, inp)   bias: (oup,) or None
    wq: (rank, inp)  bq: (rank,)  wp: (oup, rank)  bp: (oup,)
    """
    oup, inp = weight.shape
    s = jnp.float32(scale)

    w_t = weight.T.astype(jnp.float32)                       # (inp, oup)
    wq_t = wq.T.astype(jnp.float32)                          # (inp, rank)
    wp_t = wp.T.astype(jnp.float32)                          # (rank, oup)
    w_eff = w_t + s * (wq_t @ wp_t)                          # (inp, oup)

    b = jnp.zeros((oup,), jnp.float32) if bias is None else bias.astype(jnp.float32)
    b_eff = b + s * (bq.astype(jnp.float32) @ wp_t + bp.astype(jnp.float32))

    oup_pad = _round_up(oup, 128)                            # lane-dense output
    w_eff = jnp.pad(w_eff, ((0, 0), (0, oup_pad - oup)))
    b_eff = jnp.pad(b_eff, (0, oup_pad - oup)).reshape(1, oup_pad)

    return {
        "w_eff": w_eff.astype(compute_dtype),   # (inp, oup_pad)
        "b_eff": b_eff,                         # (1, oup_pad), kept f32
        "inp": inp, "oup": oup, "oup_pad": oup_pad,
        "compute_dtype": compute_dtype,
    }


def _vmem_capacity_bytes():
    try:
        info = pltpu.get_tpu_info()
        cap = getattr(info, "vmem_capacity_bytes", None)
        if cap:
            return int(cap)
    except Exception:
        pass
    return 64 << 20   # conservative fallback: v7x per-TC VMEM


def lrlinear_forward(x, params, *, out_dtype=None, tm_pref=512):
    """x: (..., inp). Returns (..., oup) in `out_dtype` (defaults to x.dtype;
    prefer bf16 on v5e when downstream allows — halves store/writeback traffic)."""
    inp, oup = params["inp"], params["oup"]
    oup_pad = params["oup_pad"]
    w_eff, b_eff = params["w_eff"], params["b_eff"]
    cdt_bytes = jnp.dtype(params["compute_dtype"]).itemsize
    out_dtype = x.dtype if out_dtype is None else out_dtype
    out_bytes = jnp.dtype(out_dtype).itemsize
    x_bytes = jnp.dtype(x.dtype).itemsize

    lead = x.shape[:-1]
    m = 1
    for d in lead:
        m *= d
    x2 = x.reshape(m, inp)          # no cast / no pad: avoids an extra HBM pass over x

    # ---- tile selection -------------------------------------------------------
    capacity = _vmem_capacity_bytes()
    budget = int(capacity * 0.65)   # headroom for Mosaic internal scratch

    tm_unit = 16 if cdt_bytes <= 2 else 8          # bf16 vregs pack (16, 128)
    if m <= 256:
        tm = m                                     # one full-extent M block (always legal)
    elif m <= 2 * tm_pref:
        tm = _round_up(pl.cdiv(m, 2), tm_unit)     # >=2 M tiles keeps both v7x TCs busy
    else:
        tm = _round_up(tm_pref, tm_unit)

    def footprint(tm_, tn_):
        # Pallas allocates 2 buffers per input/output spec even for constant
        # index maps, so the "resident" weight/bias are counted twice.
        w_buf = 2 * inp * tn_ * cdt_bytes
        b_buf = 2 * 8 * tn_ * 4                    # (1, tn) f32 pads sublanes to 8
        x_buf = 2 * tm_ * inp * x_bytes
        o_buf = 2 * tm_ * tn_ * out_bytes
        return w_buf + b_buf + x_buf + o_buf

    tn = oup_pad
    while footprint(tm, tn) > budget:
        if tn > 256:
            tn = max(256, _round_up(tn // 2, 128))   # tile oup before shrinking TM
        elif tm > 128:
            tm = max(128, _round_up(tm // 2, tm_unit))
        elif tn > 128:
            tn = 128
        else:
            break   # minimum sane tiles; vmem_limit below still covers the footprint
    # TODO(synk): for inp so large that a (128, inp) x-tile alone overflows VMEM, add a
    # K grid axis with an f32 accumulator scratch (P3 pattern); not needed for LRLinear.

    grid_n = pl.cdiv(oup_pad, tn)
    grid_m = pl.cdiv(m, tm)

    vmem_limit = int(min(0.9 * capacity, footprint(tm, tn) + (8 << 20)))
    vmem_limit = max(vmem_limit, 32 << 20)

    cost = pl.CostEstimate(
        flops=2 * m * inp * oup_pad,
        transcendentals=0,
        bytes_accessed=(grid_n * m * inp * x_bytes          # x re-streamed per N strip
                        + inp * oup_pad * cdt_bytes + oup_pad * 4
                        + m * oup_pad * out_bytes),
    )

    out = pl.pallas_call(
        _lrlinear_kernel,
        out_shape=jax.ShapeDtypeStruct((m, oup_pad), out_dtype),
        grid_spec=pltpu.PrefetchScalarGridSpec(
            num_scalar_prefetch=0,
            grid=(grid_n, grid_m),                 # N outer, M inner: each W_eff strip
            in_specs=[                             # stays resident while x tiles stream
                pl.BlockSpec((tm, inp), lambda n, i: (i, 0)),   # x tile (pipelined)
                pl.BlockSpec((inp, tn), lambda n, i: (0, n)),   # W_eff strip
                pl.BlockSpec((1, tn), lambda n, i: (0, n)),     # b_eff strip
            ],
            out_specs=pl.BlockSpec((tm, tn), lambda n, i: (i, n)),
        ),
        compiler_params=pltpu.CompilerParams(
            dimension_semantics=("parallel", "parallel"),   # megacore-shardable
            vmem_limit_bytes=vmem_limit,
        ),
        cost_estimate=cost,
    )(x2, w_eff, b_eff)

    if oup_pad != oup:
        out = out[:, :oup]
    return out.reshape(*lead, oup)


if __name__ == "__main__":
    # small shapes implied by the module: a token stream of (batch, seq, inp)
    batch, seq, inp, oup, rank = 2, 8, 32, 64, 8
    scale = 1.0  # divide_by_rank=False

    key = jax.random.PRNGKey(0)
    k_x, k_w, k_wq, k_bq, k_wp, k_bp = jax.random.split(key, 6)

    x = jax.random.normal(k_x, (batch, seq, inp), dtype=jnp.float32)

    # deterministic parameter init (matches PyTorch shapes):
    weight = 0.02 * jax.random.normal(k_w, (oup, inp), dtype=jnp.float32)  # normal_(std=0.02)
    bias = jnp.zeros((oup,), dtype=jnp.float32)                            # zeros
    wq = 0.05 * jax.random.normal(k_wq, (rank, inp), dtype=jnp.float32)
    bq = 0.01 * jax.random.normal(k_bq, (rank,), dtype=jnp.float32)
    wp = 0.05 * jax.random.normal(k_wp, (oup, rank), dtype=jnp.float32)
    bp = 0.01 * jax.random.normal(k_bp, (oup,), dtype=jnp.float32)

    # pure-JAX reference (exactly the PyTorch forward)
    shift_ref = (x @ wq.T + bq) @ wp.T + bp
    r_ref = x @ weight.T + bias
    ref = r_ref + scale * shift_ref

    # 1) exactness check: f32 compute path, tight tolerance
    params_f32 = prepare_lrlinear_params(weight, bias, wq, bq, wp, bp,
                                         scale=scale, compute_dtype=jnp.float32)
    out_f32 = jax.block_until_ready(lrlinear_forward(x, params_f32))
    assert out_f32.shape == (batch, seq, oup)
    assert jnp.allclose(out_f32, ref, atol=1e-4, rtol=1e-4), "f32 mismatch vs reference"

    # 2) fast path: bf16 MXU inputs with f32 accumulation, loose (bf16) tolerance
    params_bf16 = prepare_lrlinear_params(weight, bias, wq, bq, wp, bp,
                                          scale=scale, compute_dtype=jnp.bfloat16)
    out_bf16 = jax.block_until_ready(lrlinear_forward(x, params_bf16))
    assert out_bf16.shape == (batch, seq, oup)
    assert jnp.allclose(out_bf16.astype(jnp.float32), ref, atol=2e-2, rtol=2e-2), \
        "bf16 mismatch vs reference"

    print("KERNEL_OK")
</pallas_src>

<mosaic_0001>
module attributes {stable_mosaic.version = 11 : i64} {
  func.func @_lrlinear_kernel(%arg0: i32, %arg1: i32, %arg2: memref<16x32xf32, #tpu.memory_space<vmem>>, %arg3: memref<32x128xf32, #tpu.memory_space<vmem>>, %arg4: memref<1x128xf32, #tpu.memory_space<vmem>>, %arg5: memref<16x128xf32, #tpu.memory_space<vmem>>) attributes {dimension_semantics = [#tpu.dimension_semantics<parallel>, #tpu.dimension_semantics<parallel>], iteration_bounds = array<i64: 1, 1>, scalar_prefetch = 0 : i64, scratch_operands = 0 : i64, tpu.core_type = #tpu.core_type<tc>, window_params = [{transform_indices = @transform_0, window_bounds = array<i64: 16, 32>}, {transform_indices = @transform_1, window_bounds = array<i64: 32, 128>}, {transform_indices = @transform_2, window_bounds = array<i64: 1, 128>}, {transform_indices = @transform_3, window_bounds = array<i64: 16, 128>}]} {
    %c0 = arith.constant 0 : index
    %c0_0 = arith.constant 0 : index
    %0 = vector.load %arg2[%c0, %c0_0] : memref<16x32xf32, #tpu.memory_space<vmem>>, vector<16x32xf32>
    %c0_1 = arith.constant 0 : index
    %c0_2 = arith.constant 0 : index
    %1 = vector.load %arg3[%c0_1, %c0_2] : memref<32x128xf32, #tpu.memory_space<vmem>>, vector<32x128xf32>
    %cst = arith.constant dense<0.000000e+00> : vector<16x128xf32>
    %2 = tpu.matmul %0, %1, %cst {dimension_numbers = #tpu.dot_dimension_numbers<[1], [0], [0], [1], [0, 0, 1, 1], [], []>} : vector<16x32xf32>, vector<32x128xf32>, vector<16x128xf32> -> vector<16x128xf32>
    %c0_3 = arith.constant 0 : index
    %c0_4 = arith.constant 0 : index
    %3 = vector.load %arg4[%c0_3, %c0_4] : memref<1x128xf32, #tpu.memory_space<vmem>>, vector<1x128xf32>
    %4 = vector.broadcast %3 : vector<1x128xf32> to vector<16x128xf32>
    %5 = arith.addf %2, %4 : vector<16x128xf32>
    %c0_5 = arith.constant 0 : index
    %c0_6 = arith.constant 0 : index
    %6 = vector.load %arg5[%c0_5, %c0_6] : memref<16x128xf32, #tpu.memory_space<vmem>>, vector<16x128xf32>
    tpu.vector_store %arg5[%c0_5, %c0_6], %5 {strides = array<i32>} : memref<16x128xf32, #tpu.memory_space<vmem>>, vector<16x128xf32>,
    return
  }
  func.func @transform_0(%arg0: i32, %arg1: i32) -> (i32, i32) {
    %c0_i32 = arith.constant 0 : i32
    %c0_i32_0 = arith.constant 0 : i32
    return %arg1, %c0_i32 : i32, i32
  }
  func.func @transform_1(%arg0: i32, %arg1: i32) -> (i32, i32) {
    %c0_i32 = arith.constant 0 : i32
    %c0_i32_0 = arith.constant 0 : i32
    return %c0_i32, %arg0 : i32, i32
  }
  func.func @transform_2(%arg0: i32, %arg1: i32) -> (i32, i32) {
    %c0_i32 = arith.constant 0 : i32
    %c0_i32_0 = arith.constant 0 : i32
    return %c0_i32, %arg0 : i32, i32
  }
  func.func @transform_3(%arg0: i32, %arg1: i32) -> (i32, i32) {
    %c0_i32 = arith.constant 0 : i32
    return %arg1, %arg0 : i32, i32
  }
}

</mosaic_0001>

<llo_original>
// kernel: tpu_custom_call.1
$region0: #{tpu_custom_call.1}
  #allocation0 [shape = 'u32[]', space=smem, size = 0x4, offset = 0x4, fixed_abs, tag = 'smem constant byte address 0x4 - core index']
  #allocation1 [shape = 'u32[72,128]{1,0:T(1,128)}', space=vmem, size = 0x9000, scoped, tag = 'internal scratch']
  %s0 = inlined_call_operand.hbm [shape: f32[16,32], index: 0, kind: input, shape index: {}]
  %s1 = inlined_call_operand.hbm [shape: f32[32,128], index: 1, kind: input, shape index: {}]
  %s2 = inlined_call_operand.vmem [shape: f32[1,128], index: 2, kind: input, shape index: {}]
  %s3 = inlined_call_operand.hbm [shape: f32[16,128], index: 3, kind: output, shape index: {}]
  %s4 = sld [smem:[#allocation0]]
  $region30: #{tpu_custom_call.1} parent=0
    _
  %s6 = ssub.s32 1, %s4
  %s7 = scalar_select 0, %s6, %s4
  $region1: #{tpu_custom_call.1} parent=0
    #allocation2 [shape = 'u8[8192]{0}', space=vmem, size = 0x2000, scoped, tag = 'input window, operand 0, single buffered']
    #allocation3 [shape = 's32[1]{0}', space=sflag, size = 0x4, scoped, tag = 'scoped memory for tpu_custom_call.1']
    #allocation4 [shape = 's32[1]{0}', space=sflag, size = 0x4, scoped, tag = 'scoped memory for tpu_custom_call.1']
    #allocation5 [shape = 'u8[16384]{0}', space=vmem, size = 0x4000, scoped, tag = 'input window, operand 1, single buffered']
    #allocation6 [shape = 's32[1]{0}', space=sflag, size = 0x4, scoped, tag = 'scoped memory for tpu_custom_call.1']
    #allocation7 [shape = 'u8[8192]{0}', space=vmem, size = 0x2000, scoped, tag = 'output window, operand 0, single buffered']
    %8 = vsyncpa [#allocation3], 0
    %9 = vsyncpa [#allocation6], 0
    %10 = vsyncpa [#allocation4], 0
    // Predicated region
    $region2: #{tpu_custom_call.1} parent=1 // pred_check
      _
    $region3: #{tpu_custom_call.1} parent=1 // pred_check_branch
      %12 = sbr.rel (0) target = $region5
    $region4: #{tpu_custom_call.1} parent=1 // pred_region
      %14 = vsyncadd [#allocation3], 0
      %s15 = sshll.u32 %s0, 4
      %s16 = int_to_ptr.hbm [resolvable:$true] %s15
      %s17 = sshll.u32 [#allocation2], 4
      %s18 = int_to_ptr.vmem [resolvable:$true] %s17
      %23 = dma.hbm_to_vmem [thread:$0]  %s16, 256, %s18, [#allocation3], 128, 128, 8
    $region5: #{tpu_custom_call.1} parent=1 // pred_fallthru
      _
    // Predicated region
    $region6: #{tpu_custom_call.1} parent=1 // pred_check
      _
    $region7: #{tpu_custom_call.1} parent=1 // pred_check_branch
      %25 = sbr.rel (0) target = $region9
    $region8: #{tpu_custom_call.1} parent=1 // pred_region
      %27 = vsyncadd [#allocation6], 0
      %s28 = sshll.u32 %s1, 4
      %s29 = int_to_ptr.hbm [resolvable:$true] %s28
      %s30 = sshll.u32 [#allocation5], 4
      %s31 = int_to_ptr.vmem [resolvable:$true] %s30
      %36 = dma.hbm_to_vmem [thread:$0]  %s29, 512, %s31, [#allocation6], 128, 128, 8
    $region9: #{tpu_custom_call.1} parent=1 // pred_fallthru
      _
    // Predicated region
    $region10: #{tpu_custom_call.1} parent=1 // pred_check
      _
    $region11: #{tpu_custom_call.1} parent=1 // pred_check_branch
      %38 = sbr.rel (0) target = $region13
    $region12: #{tpu_custom_call.1} parent=1 // pred_region
      _
    $region13: #{tpu_custom_call.1} parent=1 // pred_fallthru
      _
    // Predicated region
    $region14: #{tpu_custom_call.1} parent=1 // pred_check
      _
    $region15: #{tpu_custom_call.1} parent=1 // pred_check_branch
      %40 = sbr.rel (0) target = $region17
    $region16: #{tpu_custom_call.1} parent=1 // pred_region
      %42 = dma.done [#allocation3], 256
    $region17: #{tpu_custom_call.1} parent=1 // pred_fallthru
      _
    // Predicated region
    $region18: #{tpu_custom_call.1} parent=1 // pred_check
      _
    $region19: #{tpu_custom_call.1} parent=1 // pred_check_branch
      %44 = sbr.rel (0) target = $region21
    $region20: #{tpu_custom_call.1} parent=1 // pred_region
      %46 = dma.done [#allocation6], 512
    $region21: #{tpu_custom_call.1} parent=1 // pred_fallthru
      _
    %v47 = vld [vmem:[#allocation2] sm:$0xff]
    %v48 = vld [vmem:[#allocation2 + $0x8] sm:$0xff]
    %v49 = vld [vmem:[#allocation5] sm:$0xff]
    %v50 = vld [vmem:[#allocation5 + $0x8] sm:$0xff]
    %v51 = vld [vmem:[#allocation5 + $0x10] sm:$0xff]
    %v52 = vld [vmem:[#allocation5 + $0x18] sm:$0xff]
    %v53 = vld [vmem:[%s2] sm:$0x1]
    %v55 = vperm.slane %v53, 0
    %vm57 = vcmask 261120
    %v59 = vsel %vm57, %v47, 0
    %v62 = vsel %vm57, %v48, 0
    %64 = vmatpush.msra.mxu0 0.0
    %65 = vmatpush.msra.mxu0 0.0
    %66 = vmatpush.msra.mxu0 0.0
    %67 = vmatpush.msra.mxu0 0.0
    %68 = vmatpush.msra.mxu0 0.0
    %69 = vmatpush.msra.mxu0 0.0
    %70 = vmatpush.msra.mxu0 0.0
    %71 = vmatpush.msra.mxu0 0.0
    %72 = vmatpush.msra.mxu0 0.0
    %73 = vmatpush.msra.mxu0 0.0
    %74 = vmatpush.msra.mxu0 0.0
    %75 = vmatpush.msra.mxu0 0.0
    %76 = vmatpush.msra.mxu0 %v52
    %77 = vmatpush.msra.mxu0 %v51
    %78 = vmatpush.msra.mxu0 %v50
    %79 = vmatpush.msra.mxu0 %v49
    %80 = vmatmul.f32.gmra.mxu0 %v59
    %v81 = vpop.f32.mrf.mxu0
    %v82 = vadd.f32 %v55, %v81
    %83 = vmatmul.f32.gmra.mxu0 %v62
    %v84 = vpop.f32.mrf.mxu0
    %v85 = vadd.f32 %v55, %v84
    %86 = vdwg.mxu0
    %87 = vst [vmem:[#allocation7] sm:$0xff] %v82
    %88 = vst [vmem:[#allocation7 + $0x8] sm:$0xff] %v85
    // Predicated region
    $region22: #{tpu_custom_call.1} parent=1 // pred_check
      _
    $region23: #{tpu_custom_call.1} parent=1 // pred_check_branch
      %90 = sbr.rel (0) target = $region25
    $region24: #{tpu_custom_call.1} parent=1 // pred_region
      %92 = vsyncadd [#allocation4], 0
      %s93 = sshll.u32 [#allocation7], 4
      %s94 = int_to_ptr.vmem [resolvable:$true] %s93
      %s95 = sshll.u32 %s3, 4
      %s96 = int_to_ptr.hbm [resolvable:$true] %s95
      %101 = dma.vmem_to_hbm [thread:$0]  %s94, 256, %s96, [#allocation4], 128, 128, 8
    $region25: #{tpu_custom_call.1} parent=1 // pred_fallthru
      _
    // Predicated region
    $region26: #{tpu_custom_call.1} parent=1 // pred_check
      _
    $region27: #{tpu_custom_call.1} parent=1 // pred_check_branch
      %103 = sbr.rel (0) target = $region29
    $region28: #{tpu_custom_call.1} parent=1 // pred_region
      %105 = dma.done [#allocation4], 256
    $region29: #{tpu_custom_call.1} parent=1 // pred_fallthru
      _
    %106 = vsyncpa [#allocation3], 1
    %107 = vsyncpa [#allocation6], 1
    %108 = vsyncpa [#allocation4], 1

</llo_original>
